<compile_context>
chip_gen: v6e
topology: v6e:2x2x1
jax: 0.10.0
libtpu: 0.0.40
codegen_flags: <defaults>
</compile_context>

<pallas_src>
import jax
import jax.numpy as jnp
from jax import lax
from jax.experimental import pallas as pl
from jax.experimental.pallas import tpu as pltpu

n_gaussians = 2
n_hidden = 10
n_input = 7
n_layers = 4

W_ROWS = n_layers * n_hidden + 3 * n_gaussians   # 46 stacked W^T rows
HEAD_ROW = n_layers * n_hidden                   # 40: first head row
OUT_ROWS = 3 * n_gaussians                       # 6 output rows
B_COLS = n_layers + 1                            # 4 trunk bias cols + 1 head col


def _round_up(n, m):
    return ((n + m - 1) // m) * m


def mdn_kernel(x_ref, w_ref, b_ref, out_ref):
    # x_ref  : (TB, n_input)   batch-major input tile (batch on sublanes here)
    # w_ref  : (46, n_hidden)  stacked transposed weights (VMEM-resident)
    # b_ref  : (n_hidden, 5)   bias columns             (VMEM-resident)
    # out_ref: (6, TB)         rows [pi0, pi1, sigma0, sigma1, mu0, mu1]
    x = x_ref[...]                                          # (TB, 7)

    # Layer 0: contract x's feature dim as the RHS operand so the result comes
    # out directly as (n_hidden, TB) -- batch on the lane axis, no transpose
    # of x in HBM or VMEM.
    w0 = w_ref[0:n_hidden, 0:n_input]                       # (10, 7)
    h = lax.dot_general(w0, x, (((1,), (1,)), ((), ())),
                        preferred_element_type=jnp.float32)  # (10, TB)
    h = jnp.tanh(h + b_ref[:, 0:1])

    # Layers 1..3: plain (10,10)@(10,TB) MXU matmuls; tanh is lane-dense.
    for layer in range(1, n_layers):
        lo = layer * n_hidden
        wl = w_ref[lo:lo + n_hidden, :]                     # sublane slice: free
        h = jnp.tanh(jnp.dot(wl, h, preferred_element_type=jnp.float32)
                     + b_ref[:, layer:layer + 1])

    # Fused heads: one (6,10)@(10,TB) matmul + one bias add.
    wh = w_ref[HEAD_ROW:HEAD_ROW + OUT_ROWS, :]             # (6, 10)
    heads = (jnp.dot(wh, h, preferred_element_type=jnp.float32)
             + b_ref[0:OUT_ROWS, n_layers:n_layers + 1])    # (6, TB)

    # Closed-form 2-class softmax via tanh on the EUP:
    #   softmax([l0, l1])[0] == sigmoid(l0 - l1) == 0.5*(1 + tanh((l0-l1)/2))
    # No cross-lane reduction, no divide, no overflow for extreme logits.
    pi0 = 0.5 * (jnp.tanh(0.5 * (heads[0:1, :] - heads[1:2, :])) + 1.0)

    # Lane-dense sublane-row stores (no lane-dim concatenation).
    out_ref[0:1, :] = pi0
    out_ref[1:2, :] = 1.0 - pi0
    out_ref[2:4, :] = jnp.exp(heads[2:4, :])
    out_ref[4:6, :] = heads[4:6, :]


def make_params(key):
    """Deterministic synthetic parameters matching the PyTorch module shapes.

    PyTorch stores Linear weights as (out, in); we keep them as (in, out) here
    and transpose once at pack time.
    """
    dims = [(n_input, n_hidden)] + [(n_hidden, n_hidden)] * (n_layers - 1)
    params = []
    for (fin, fout) in dims:
        key, kw, kb = jax.random.split(key, 3)
        bound = 1.0 / jnp.sqrt(fin)
        params.append(jax.random.uniform(kw, (fin, fout), jnp.float32, -bound, bound))
        params.append(jax.random.uniform(kb, (1, fout), jnp.float32, -bound, bound))
    for _ in range(3):  # pi, sigma, mu heads
        key, kw, kb = jax.random.split(key, 3)
        bound = 1.0 / jnp.sqrt(n_hidden)
        params.append(jax.random.uniform(kw, (n_hidden, n_gaussians),
                                         jnp.float32, -bound, bound))
        params.append(jax.random.uniform(kb, (1, n_gaussians),
                                         jnp.float32, -bound, bound))
    return params


def pack_params(params):
    """Pack 14 parameter arrays into one W^T slab (46,10) and one bias slab (10,5)."""
    (w1, b1, w2, b2, w3, b3, w4, b4,
     wpi, bpi, wsig, bsig, wmu, bmu) = params
    # Weights: transpose each to (out, in) and stack along the leading axis.
    w1t = jnp.pad(w1.T, ((0, 0), (0, n_hidden - n_input)))        # (10, 10)
    w_packed = jnp.concatenate(
        [w1t, w2.T, w3.T, w4.T, wpi.T, wsig.T, wmu.T], axis=0)    # (46, 10)
    # Biases: one (10,1) column per trunk layer plus one column of head biases.
    b_trunk = jnp.concatenate([b1, b2, b3, b4], axis=0).T         # (10, 4)
    b_heads = jnp.concatenate([bpi, bsig, bmu], axis=1)           # (1, 6)
    b_heads = jnp.pad(b_heads, ((0, 0), (0, n_hidden - OUT_ROWS))).T  # (10, 1)
    b_packed = jnp.concatenate([b_trunk, b_heads], axis=1)        # (10, 5)
    return w_packed, b_packed


def mdn_forward(x, w_packed, b_packed, *, block_batch=16384):
    batch = x.shape[0]

    # Batch tile: multiple of 128 (batch rides the lane axis of the output).
    tb = min(block_batch, _round_up(batch, 128))
    padded = _round_up(batch, tb)
    # Keep >= 2 grid steps for large single-tile batches so the "parallel"
    # axis can shard across v7x's two TensorCores.
    if padded // tb < 2 and tb > 1024:
        tb = _round_up(tb // 2, 128)
        padded = _round_up(batch, tb)

    if padded != batch:
        x = jnp.pad(x, ((0, padded - batch), (0, 0)))   # batch pad only; no feature pad
    grid = (padded // tb,)

    cost = pl.CostEstimate(
        flops=2 * padded * (n_input * n_hidden
                            + (n_layers - 1) * n_hidden * n_hidden
                            + n_hidden * OUT_ROWS),
        transcendentals=padded * (n_layers * n_hidden + 1 + n_gaussians),
        bytes_accessed=(padded * (n_input + OUT_ROWS) * 4
                        + (W_ROWS * n_hidden + n_hidden * B_COLS) * 4),
    )

    out = pl.pallas_call(
        mdn_kernel,
        out_shape=jax.ShapeDtypeStruct((OUT_ROWS, padded), jnp.float32),
        grid=grid,
        in_specs=[
            pl.BlockSpec((tb, n_input), lambda i: (i, 0)),        # x tile
            pl.BlockSpec((W_ROWS, n_hidden), lambda i: (0, 0)),   # weights (resident)
            pl.BlockSpec((n_hidden, B_COLS), lambda i: (0, 0)),   # biases  (resident)
        ],
        out_specs=pl.BlockSpec((OUT_ROWS, tb), lambda i: (0, i)), # lane-dense output
        compiler_params=pltpu.CompilerParams(
            dimension_semantics=("parallel",),
            vmem_limit_bytes=32 * 1024 * 1024),
        cost_estimate=cost,
    )(x, w_packed, b_packed)

    out = out[:, :batch]
    pi = jnp.transpose(out[0:n_gaussians, :])
    sigma = jnp.transpose(out[n_gaussians:2 * n_gaussians, :])
    mu = jnp.transpose(out[2 * n_gaussians:3 * n_gaussians, :])
    return pi, sigma, mu


def mdn_reference(x, params):
    (w1, b1, w2, b2, w3, b3, w4, b4,
     wpi, bpi, wsig, bsig, wmu, bmu) = params
    h = jnp.tanh(x @ w1 + b1)
    h = jnp.tanh(h @ w2 + b2)
    h = jnp.tanh(h @ w3 + b3)
    h = jnp.tanh(h @ w4 + b4)
    pi = jax.nn.softmax(h @ wpi + bpi, axis=-1)
    sigma = jnp.exp(h @ wsig + bsig)
    mu = h @ wmu + bmu
    return pi, sigma, mu


if __name__ == "__main__":
    key = jax.random.PRNGKey(0)
    key, kx = jax.random.split(key)
    params = make_params(key)
    w_packed, b_packed = pack_params(params)

    # Small demo batch (single grid step; batch padded 8 -> 128 internally).
    batch = 8
    x = jax.random.normal(kx, (batch, n_input), jnp.float32)
    pi, sigma, mu = mdn_forward(x, w_packed, b_packed)
    jax.block_until_ready((pi, sigma, mu))

    pi_ref, sigma_ref, mu_ref = mdn_reference(x, params)
    assert pi.shape == (batch, n_gaussians)
    assert jnp.allclose(pi, pi_ref, atol=1e-5, rtol=1e-5)
    assert jnp.allclose(sigma, sigma_ref, atol=1e-5, rtol=1e-5)
    assert jnp.allclose(mu, mu_ref, atol=1e-5, rtol=1e-5)
    assert jnp.allclose(jnp.sum(pi, axis=-1), 1.0, atol=1e-5)

    # Multi-step grid: exercises resident weights, batch padding and the
    # lane-tiled (6, padded) output across several grid iterations.
    key, kx2 = jax.random.split(key)
    x2 = jax.random.normal(kx2, (2000, n_input), jnp.float32)
    pi2, sigma2, mu2 = mdn_forward(x2, w_packed, b_packed, block_batch=512)
    jax.block_until_ready((pi2, sigma2, mu2))
    pi2_ref, sigma2_ref, mu2_ref = mdn_reference(x2, params)
    assert jnp.allclose(pi2, pi2_ref, atol=1e-5, rtol=1e-5)
    assert jnp.allclose(sigma2, sigma2_ref, atol=1e-5, rtol=1e-5)
    assert jnp.allclose(mu2, mu2_ref, atol=1e-5, rtol=1e-5)

    print("KERNEL_OK")
</pallas_src>

<mosaic_0001>
module attributes {stable_mosaic.version = 11 : i64} {
  func.func @mdn_kernel(%arg0: i32, %arg1: memref<128x7xf32, #tpu.memory_space<vmem>>, %arg2: memref<46x10xf32, #tpu.memory_space<vmem>>, %arg3: memref<10x5xf32, #tpu.memory_space<vmem>>, %arg4: memref<6x128xf32, #tpu.memory_space<vmem>>) attributes {dimension_semantics = [#tpu.dimension_semantics<parallel>], iteration_bounds = array<i64: 1>, scalar_prefetch = 0 : i64, scratch_operands = 0 : i64, tpu.core_type = #tpu.core_type<tc>, window_params = [{transform_indices = @transform_0, window_bounds = array<i64: 128, 7>}, {pipeline_mode = #tpu.pipeline_mode<synchronous>, transform_indices = @transform_1, window_bounds = array<i64: 46, 10>}, {pipeline_mode = #tpu.pipeline_mode<synchronous>, transform_indices = @transform_2, window_bounds = array<i64: 10, 5>}, {transform_indices = @transform_3, window_bounds = array<i64: 6, 128>}]} {
    %c0 = arith.constant 0 : index
    %c0_0 = arith.constant 0 : index
    %0 = vector.load %arg1[%c0, %c0_0] : memref<128x7xf32, #tpu.memory_space<vmem>>, vector<128x7xf32>
    %c0_1 = arith.constant 0 : index
    %c0_2 = arith.constant 0 : index
    %1 = vector.load %arg2[%c0_1, %c0_2] : memref<46x10xf32, #tpu.memory_space<vmem>>, vector<10x7xf32>
    %cst = arith.constant dense<0.000000e+00> : vector<10x128xf32>
    %2 = tpu.matmul %1, %0, %cst {dimension_numbers = #tpu.dot_dimension_numbers<[1], [1], [0], [0], [0, 0, 1, 0], [], []>} : vector<10x7xf32>, vector<128x7xf32>, vector<10x128xf32> -> vector<10x128xf32>
    %c0_3 = arith.constant 0 : index
    %c0_4 = arith.constant 0 : index
    %3 = vector.load %arg3[%c0_3, %c0_4] : memref<10x5xf32, #tpu.memory_space<vmem>>, vector<10x1xf32>
    %4 = vector.broadcast %3 : vector<10x1xf32> to vector<10x128xf32>
    %5 = arith.addf %2, %4 : vector<10x128xf32>
    %6 = math.tanh %5 : vector<10x128xf32>
    %c10 = arith.constant 10 : index
    %c0_5 = arith.constant 0 : index
    %7 = vector.load %arg2[%c10, %c0_5] : memref<46x10xf32, #tpu.memory_space<vmem>>, vector<10x10xf32>
    %cst_6 = arith.constant dense<0.000000e+00> : vector<10x128xf32>
    %8 = tpu.matmul %7, %6, %cst_6 {dimension_numbers = #tpu.dot_dimension_numbers<[1], [0], [0], [1], [0, 0, 1, 1], [], []>} : vector<10x10xf32>, vector<10x128xf32>, vector<10x128xf32> -> vector<10x128xf32>
    %c0_7 = arith.constant 0 : index
    %c1 = arith.constant 1 : index
    %9 = vector.load %arg3[%c0_7, %c1] : memref<10x5xf32, #tpu.memory_space<vmem>>, vector<10x1xf32>
    %10 = vector.broadcast %9 : vector<10x1xf32> to vector<10x128xf32>
    %11 = arith.addf %8, %10 : vector<10x128xf32>
    %12 = math.tanh %11 : vector<10x128xf32>
    %c20 = arith.constant 20 : index
    %c0_8 = arith.constant 0 : index
    %13 = vector.load %arg2[%c20, %c0_8] : memref<46x10xf32, #tpu.memory_space<vmem>>, vector<10x10xf32>
    %cst_9 = arith.constant dense<0.000000e+00> : vector<10x128xf32>
    %14 = tpu.matmul %13, %12, %cst_9 {dimension_numbers = #tpu.dot_dimension_numbers<[1], [0], [0], [1], [0, 0, 1, 1], [], []>} : vector<10x10xf32>, vector<10x128xf32>, vector<10x128xf32> -> vector<10x128xf32>
    %c0_10 = arith.constant 0 : index
    %c2 = arith.constant 2 : index
    %15 = vector.load %arg3[%c0_10, %c2] : memref<10x5xf32, #tpu.memory_space<vmem>>, vector<10x1xf32>
    %16 = vector.broadcast %15 : vector<10x1xf32> to vector<10x128xf32>
    %17 = arith.addf %14, %16 : vector<10x128xf32>
    %18 = math.tanh %17 : vector<10x128xf32>
    %c30 = arith.constant 30 : index
    %c0_11 = arith.constant 0 : index
    %19 = vector.load %arg2[%c30, %c0_11] : memref<46x10xf32, #tpu.memory_space<vmem>>, vector<10x10xf32>
    %cst_12 = arith.constant dense<0.000000e+00> : vector<10x128xf32>
    %20 = tpu.matmul %19, %18, %cst_12 {dimension_numbers = #tpu.dot_dimension_numbers<[1], [0], [0], [1], [0, 0, 1, 1], [], []>} : vector<10x10xf32>, vector<10x128xf32>, vector<10x128xf32> -> vector<10x128xf32>
    %c0_13 = arith.constant 0 : index
    %c3 = arith.constant 3 : index
    %21 = vector.load %arg3[%c0_13, %c3] : memref<10x5xf32, #tpu.memory_space<vmem>>, vector<10x1xf32>
    %22 = vector.broadcast %21 : vector<10x1xf32> to vector<10x128xf32>
    %23 = arith.addf %20, %22 : vector<10x128xf32>
    %24 = math.tanh %23 : vector<10x128xf32>
    %c40 = arith.constant 40 : index
    %c0_14 = arith.constant 0 : index
    %25 = vector.load %arg2[%c40, %c0_14] : memref<46x10xf32, #tpu.memory_space<vmem>>, vector<6x10xf32>
    %cst_15 = arith.constant dense<0.000000e+00> : vector<6x128xf32>
    %26 = tpu.matmul %25, %24, %cst_15 {dimension_numbers = #tpu.dot_dimension_numbers<[1], [0], [0], [1], [0, 0, 1, 1], [], []>} : vector<6x10xf32>, vector<10x128xf32>, vector<6x128xf32> -> vector<6x128xf32>
    %c0_16 = arith.constant 0 : index
    %c4 = arith.constant 4 : index
    %27 = vector.load %arg3[%c0_16, %c4] : memref<10x5xf32, #tpu.memory_space<vmem>>, vector<6x1xf32>
    %28 = vector.broadcast %27 : vector<6x1xf32> to vector<6x128xf32>
    %29 = arith.addf %26, %28 : vector<6x128xf32>
    %30 = vector.extract_strided_slice %29 {offsets = [0, 0], sizes = [1, 128], strides = [1, 1]} : vector<6x128xf32> to vector<1x128xf32>
    %31 = vector.extract_strided_slice %29 {offsets = [1, 0], sizes = [1, 128], strides = [1, 1]} : vector<6x128xf32> to vector<1x128xf32>
    %32 = arith.subf %30, %31 : vector<1x128xf32>
    %cst_17 = arith.constant 5.000000e-01 : f32
    %33 = vector.broadcast %cst_17 : f32 to vector<1x128xf32>
    %34 = arith.mulf %33, %32 : vector<1x128xf32>
    %35 = math.tanh %34 : vector<1x128xf32>
    %cst_18 = arith.constant 1.000000e+00 : f32
    %36 = vector.broadcast %cst_18 : f32 to vector<1x128xf32>
    %37 = arith.addf %35, %36 : vector<1x128xf32>
    %cst_19 = arith.constant 5.000000e-01 : f32
    %38 = vector.broadcast %cst_19 : f32 to vector<1x128xf32>
    %39 = arith.mulf %38, %37 : vector<1x128xf32>
    %c0_20 = arith.constant 0 : index
    %c0_21 = arith.constant 0 : index
    %40 = vector.load %arg4[%c0_20, %c0_21] : memref<6x128xf32, #tpu.memory_space<vmem>>, vector<1x128xf32>
    tpu.vector_store %arg4[%c0_20, %c0_21], %39 {strides = array<i32>} : memref<6x128xf32, #tpu.memory_space<vmem>>, vector<1x128xf32>,
    %cst_22 = arith.constant 1.000000e+00 : f32
    %41 = vector.broadcast %cst_22 : f32 to vector<1x128xf32>
    %42 = arith.subf %41, %39 : vector<1x128xf32>
    %c1_23 = arith.constant 1 : index
    %c0_24 = arith.constant 0 : index
    %43 = vector.load %arg4[%c1_23, %c0_24] : memref<6x128xf32, #tpu.memory_space<vmem>>, vector<1x128xf32>
    tpu.vector_store %arg4[%c1_23, %c0_24], %42 {strides = array<i32>} : memref<6x128xf32, #tpu.memory_space<vmem>>, vector<1x128xf32>,
    %44 = vector.extract_strided_slice %29 {offsets = [2, 0], sizes = [2, 128], strides = [1, 1]} : vector<6x128xf32> to vector<2x128xf32>
    %45 = math.exp %44 : vector<2x128xf32>
    %c2_25 = arith.constant 2 : index
    %c0_26 = arith.constant 0 : index
    %46 = vector.load %arg4[%c2_25, %c0_26] : memref<6x128xf32, #tpu.memory_space<vmem>>, vector<2x128xf32>
    tpu.vector_store %arg4[%c2_25, %c0_26], %45 {strides = array<i32>} : memref<6x128xf32, #tpu.memory_space<vmem>>, vector<2x128xf32>,
    %47 = vector.extract_strided_slice %29 {offsets = [4, 0], sizes = [2, 128], strides = [1, 1]} : vector<6x128xf32> to vector<2x128xf32>
    %c4_27 = arith.constant 4 : index
    %c0_28 = arith.constant 0 : index
    %48 = vector.load %arg4[%c4_27, %c0_28] : memref<6x128xf32, #tpu.memory_space<vmem>>, vector<2x128xf32>
    tpu.vector_store %arg4[%c4_27, %c0_28], %47 {strides = array<i32>} : memref<6x128xf32, #tpu.memory_space<vmem>>, vector<2x128xf32>,
    return
  }
  func.func @transform_0(%arg0: i32) -> (i32, i32) {
    %c0_i32 = arith.constant 0 : i32
    %c0_i32_0 = arith.constant 0 : i32
    return %arg0, %c0_i32 : i32, i32
  }
  func.func @transform_1(%arg0: i32) -> (i32, i32) {
    %c0_i32 = arith.constant 0 : i32
    %c0_i32_0 = arith.constant 0 : i32
    %c0_i32_1 = arith.constant 0 : i32
    return %c0_i32, %c0_i32_0 : i32, i32
  }
  func.func @transform_2(%arg0: i32) -> (i32, i32) {
    %c0_i32 = arith.constant 0 : i32
    %c0_i32_0 = arith.constant 0 : i32
    %c0_i32_1 = arith.constant 0 : i32
    return %c0_i32, %c0_i32_0 : i32, i32
  }
  func.func @transform_3(%arg0: i32) -> (i32, i32) {
    %c0_i32 = arith.constant 0 : i32
    %c0_i32_0 = arith.constant 0 : i32
    return %c0_i32, %arg0 : i32, i32
  }
}

</mosaic_0001>

<llo_original>
// kernel: tpu_custom_call.1
$region0: #{tpu_custom_call.1}
  #allocation0 [shape = 'u32[]', space=smem, size = 0x4, offset = 0x4, fixed_abs, tag = 'smem constant byte address 0x4 - core index']
  #allocation1 [shape = 'u32[144,128]{1,0:T(1,128)}', space=vmem, size = 0x12000, scoped, tag = 'internal scratch']
  %s0 = inlined_call_operand.vmem [shape: f32[128,7], index: 0, kind: input, shape index: {}]
  %s1 = inlined_call_operand.vmem [shape: f32[46,10], index: 1, kind: input, shape index: {}]
  %s2 = inlined_call_operand.vmem [shape: f32[10,5], index: 2, kind: input, shape index: {}]
  %s3 = inlined_call_operand.hbm [shape: f32[6,128], index: 3, kind: output, shape index: {}]
  %s4 = sld [smem:[#allocation0]]
  $region22: #{tpu_custom_call.1} parent=0
    _
  %s6 = ssub.s32 1, %s4
  %s7 = scalar_select 0, %s6, %s4
  $region1: #{tpu_custom_call.1} parent=0
    #allocation2 [shape = 'u8[4096]{0}', space=vmem, size = 0x1000, scoped, tag = 'output window, operand 0, single buffered']
    #allocation3 [shape = 's32[1]{0}', space=sflag, size = 0x4, scoped, tag = 'scoped memory for tpu_custom_call.1']
    %8 = vsyncpa [#allocation3], 0
    // Predicated region
    $region2: #{tpu_custom_call.1} parent=1 // pred_check
      _
    $region3: #{tpu_custom_call.1} parent=1 // pred_check_branch
      %10 = sbr.rel (0) target = $region5
    $region4: #{tpu_custom_call.1} parent=1 // pred_region
      _
    $region5: #{tpu_custom_call.1} parent=1 // pred_fallthru
      _
    // Predicated region
    $region6: #{tpu_custom_call.1} parent=1 // pred_check
      _
    $region7: #{tpu_custom_call.1} parent=1 // pred_check_branch
      %12 = sbr.rel (0) target = $region9
    $region8: #{tpu_custom_call.1} parent=1 // pred_region
      _
    $region9: #{tpu_custom_call.1} parent=1 // pred_fallthru
      _
    // Predicated region
    $region10: #{tpu_custom_call.1} parent=1 // pred_check
      _
    $region11: #{tpu_custom_call.1} parent=1 // pred_check_branch
      %14 = sbr.rel (0) target = $region13
    $region12: #{tpu_custom_call.1} parent=1 // pred_region
      _
    $region13: #{tpu_custom_call.1} parent=1 // pred_fallthru
      _
    %v15 = vld [vmem:[%s0] sm:$0xff]
    %v16 = vld [vmem:[%s0 + $0x8] sm:$0xff]
    %v17 = vld [vmem:[%s0 + $0x10] sm:$0xff]
    %v18 = vld [vmem:[%s0 + $0x18] sm:$0xff]
    %v19 = vld [vmem:[%s0 + $0x20] sm:$0xff]
    %v20 = vld [vmem:[%s0 + $0x28] sm:$0xff]
    %v21 = vld [vmem:[%s0 + $0x30] sm:$0xff]
    %v22 = vld [vmem:[%s0 + $0x38] sm:$0xff]
    %v23 = vld [vmem:[%s0 + $0x40] sm:$0xff]
    %v24 = vld [vmem:[%s0 + $0x48] sm:$0xff]
    %v25 = vld [vmem:[%s0 + $0x50] sm:$0xff]
    %v26 = vld [vmem:[%s0 + $0x58] sm:$0xff]
    %v27 = vld [vmem:[%s0 + $0x60] sm:$0xff]
    %v28 = vld [vmem:[%s0 + $0x68] sm:$0xff]
    %v29 = vld [vmem:[%s0 + $0x70] sm:$0xff]
    %v30 = vld [vmem:[%s0 + $0x78] sm:$0xff]
    %v31 = vld [vmem:[%s1] sm:$0xff]
    %v32 = vld [vmem:[%s1 + $0x8] sm:$0x3]
    %v33 = vld [vmem:[%s2] sm:$0xff]
    %v34 = vld [vmem:[%s2 + $0x8] sm:$0x3]
    %36 = vset.pattern.permute.xlu0 0
    %37 = vperm.xlu0 %36, %v33
    %v38 = vpop.permute.xlu0 %37
    %41 = vset.pattern.permute.xlu0 0
    %42 = vperm.xlu0 %41, %v34
    %v43 = vpop.permute.xlu0 %42
    %vm45 = vcmask 56320
    %v47 = vsel %vm45, %v31, 0
    %v50 = vsel %vm45, %v32, 0
    %v53 = vsel %vm45, %v15, 0
    %v56 = vsel %vm45, %v16, 0
    %v59 = vsel %vm45, %v17, 0
    %v62 = vsel %vm45, %v18, 0
    %v65 = vsel %vm45, %v19, 0
    %v68 = vsel %vm45, %v20, 0
    %v71 = vsel %vm45, %v21, 0
    %v74 = vsel %vm45, %v22, 0
    %v77 = vsel %vm45, %v23, 0
    %v80 = vsel %vm45, %v24, 0
    %v83 = vsel %vm45, %v25, 0
    %v86 = vsel %vm45, %v26, 0
    %v89 = vsel %vm45, %v27, 0
    %v92 = vsel %vm45, %v28, 0
    %v95 = vsel %vm45, %v29, 0
    %v98 = vsel %vm45, %v30, 0
    %100 = vmatprep.subr.mxu0 0.0
    %101 = vmatpush1.xpose.msra.mxu0 %v98
    %102 = vmatprep.subr.mxu0 0.0
    %103 = vmatpush1.xpose.msra.mxu0 %v95
    %104 = vmatprep.subr.mxu0 0.0
    %105 = vmatpush1.xpose.msra.mxu0 %v92
    %106 = vmatprep.subr.mxu0 0.0
    %107 = vmatpush1.xpose.msra.mxu0 %v89
    %108 = vmatprep.subr.mxu0 0.0
    %109 = vmatpush1.xpose.msra.mxu0 %v86
    %110 = vmatprep.subr.mxu0 0.0
    %111 = vmatpush1.xpose.msra.mxu0 %v83
    %112 = vmatprep.subr.mxu0 0.0
    %113 = vmatpush1.xpose.msra.mxu0 %v80
    %114 = vmatprep.subr.mxu0 0.0
    %115 = vmatpush1.xpose.msra.mxu0 %v77
    %116 = vmatprep.subr.mxu0 0.0
    %117 = vmatpush1.xpose.msra.mxu0 %v74
    %118 = vmatprep.subr.mxu0 0.0
    %119 = vmatpush1.xpose.msra.mxu0 %v71
    %120 = vmatprep.subr.mxu0 0.0
    %121 = vmatpush1.xpose.msra.mxu0 %v68
    %122 = vmatprep.subr.mxu0 0.0
    %123 = vmatpush1.xpose.msra.mxu0 %v65
    %124 = vmatprep.subr.mxu0 0.0
    %125 = vmatpush1.xpose.msra.mxu0 %v62
    %126 = vmatprep.subr.mxu0 0.0
    %127 = vmatpush1.xpose.msra.mxu0 %v59
    %128 = vmatprep.subr.mxu0 0.0
    %129 = vmatpush1.xpose.msra.mxu0 %v56
    %130 = vmatprep.subr.mxu0 0.0
    %131 = vmatpush1.xpose.msra.mxu0 %v53
    %132 = vmatprep.subr.mxu0 0.0
    %133 = vmatpush2.xpose.msra.mxu0 0.0
    %134 = vmatprep.subr.mxu0 0.0
    %135 = vmatpush2.xpose.msra.mxu0 0.0
    %136 = vmatprep.subr.mxu0 0.0
    %137 = vmatpush2.xpose.msra.mxu0 0.0
    %138 = vmatprep.subr.mxu0 0.0
    %139 = vmatpush2.xpose.msra.mxu0 0.0
    %140 = vmatprep.subr.mxu0 0.0
    %141 = vmatpush2.xpose.msra.mxu0 0.0
    %142 = vmatprep.subr.mxu0 0.0
    %143 = vmatpush2.xpose.msra.mxu0 0.0
    %144 = vmatprep.subr.mxu0 0.0
    %145 = vmatpush2.xpose.msra.mxu0 0.0
    %146 = vmatprep.subr.mxu0 0.0
    %147 = vmatpush2.xpose.msra.mxu0 0.0
    %148 = vmatprep.subr.mxu0 0.0
    %149 = vmatpush2.xpose.msra.mxu0 0.0
    %150 = vmatprep.subr.mxu0 0.0
    %151 = vmatpush2.xpose.msra.mxu0 0.0
    %152 = vmatprep.subr.mxu0 0.0
    %153 = vmatpush2.xpose.msra.mxu0 0.0
    %154 = vmatprep.subr.mxu0 0.0
    %155 = vmatpush2.xpose.msra.mxu0 0.0
    %156 = vmatprep.subr.mxu0 0.0
    %157 = vmatpush2.xpose.msra.mxu0 0.0
    %158 = vmatprep.subr.mxu0 0.0
    %159 = vmatpush2.xpose.msra.mxu0 0.0
    %160 = vmatprep.subr.mxu0 0.0
    %161 = vmatpush2.xpose.msra.mxu0 0.0
    %162 = vmatprep.subr.mxu0 0.0
    %163 = vmatpush2.xpose.msra.mxu0 0.0
    %164 = vmatprep.mubr.f32.mxu0 0.0
    %165 = vmatmul.mubr.f32.gmra.mxu0 %v47
    %v166 = vpop.f32.mrf.mxu0
    %v167 = vadd.f32 %v38, %v166
    %v168 = vpop.f32.mrf.mxu0
    %169 = vmatprep.mubr.f32.mxu0 0.0
    %170 = vmatmul.mubr.f32.gmra.mxu0 %v50
    %v171 = vpop.f32.mrf.mxu0
    %v172 = vadd.f32 %v43, %v171
    %v173 = vpop.f32.mrf.mxu0
    %174 = vdwg.mxu0
    %v175 = vtanh.pop %v167
    %v176 = vtanh.pop %v172
    %v177 = vld [vmem:[%s1 + $0xa] sm:$0xff]
    %v178 = vld [vmem:[%s1 + $0x12] sm:$0x3]
    %179 = vset.pattern.permute.xlu0 1
    %180 = vperm.xlu0 %179, %v33
    %v181 = vpop.permute.xlu0 %180
    %183 = vset.pattern.permute.xlu0 1
    %184 = vperm.xlu0 %183, %v34
    %v185 = vpop.permute.xlu0 %184
    %vm187 = vcmask 80896
    %v189 = vsel %vm187, %v177, 0
    %v192 = vsel %vm187, %v178, 0
    %vm194 = vcmask 1041408
    %v196 = vsel %vm194, %v176, 0
    %198 = vmatprep.subr.mxu0 0.0
    %199 = vmatpush1.msra.mxu0 0.0
    %200 = vmatprep.subr.mxu0 0.0
    %201 = vmatpush1.msra.mxu0 0.0
    %202 = vmatprep.subr.mxu0 0.0
    %203 = vmatpush1.msra.mxu0 0.0
    %204 = vmatprep.subr.mxu0 0.0
    %205 = vmatpush1.msra.mxu0 0.0
    %206 = vmatprep.subr.mxu0 0.0
    %207 = vmatpush1.msra.mxu0 0.0
    %208 = vmatprep.subr.mxu0 0.0
    %209 = vmatpush1.msra.mxu0 0.0
    %210 = vmatprep.subr.mxu0 0.0
    %211 = vmatpush1.msra.mxu0 0.0
    %212 = vmatprep.subr.mxu0 0.0
    %213 = vmatpush1.msra.mxu0 0.0
    %214 = vmatprep.subr.mxu0 0.0
    %215 = vmatpush1.msra.mxu0 0.0
    %216 = vmatprep.subr.mxu0 0.0
    %217 = vmatpush1.msra.mxu0 0.0
    %218 = vmatprep.subr.mxu0 0.0
    %219 = vmatpush1.msra.mxu0 0.0
    %220 = vmatprep.subr.mxu0 0.0
    %221 = vmatpush1.msra.mxu0 0.0
    %222 = vmatprep.subr.mxu0 0.0
    %223 = vmatpush1.msra.mxu0 0.0
    %224 = vmatprep.subr.mxu0 0.0
    %225 = vmatpush1.msra.mxu0 0.0
    %226 = vmatprep.subr.mxu0 0.0
    %227 = vmatpush1.msra.mxu0 %v196
    %228 = vmatprep.subr.mxu0 0.0
    %229 = vmatpush1.msra.mxu0 %v175
    %230 = vmatprep.subr.mxu0 0.0
    %231 = vmatpush2.msra.mxu0 0.0
    %232 = vmatprep.subr.mxu0 0.0
    %233 = vmatpush2.msra.mxu0 0.0
    %234 = vmatprep.subr.mxu0 0.0
    %235 = vmatpush2.msra.mxu0 0.0
    %236 = vmatprep.subr.mxu0 0.0
    %237 = vmatpush2.msra.mxu0 0.0
    %238 = vmatprep.subr.mxu0 0.0
    %239 = vmatpush2.msra.mxu0 0.0
    %240 = vmatprep.subr.mxu0 0.0
    %241 = vmatpush2.msra.mxu0 0.0
    %242 = vmatprep.subr.mxu0 0.0
    %243 = vmatpush2.msra.mxu0 0.0
    %244 = vmatprep.subr.mxu0 0.0
    %245 = vmatpush2.msra.mxu0 0.0
    %246 = vmatprep.subr.mxu0 0.0
    %247 = vmatpush2.msra.mxu0 0.0
    %248 = vmatprep.subr.mxu0 0.0
    %249 = vmatpush2.msra.mxu0 0.0
    %250 = vmatprep.subr.mxu0 0.0
    %251 = vmatpush2.msra.mxu0 0.0
    %252 = vmatprep.subr.mxu0 0.0
    %253 = vmatpush2.msra.mxu0 0.0
    %254 = vmatprep.subr.mxu0 0.0
    %255 = vmatpush2.msra.mxu0 0.0
    %256 = vmatprep.subr.mxu0 0.0
    %257 = vmatpush2.msra.mxu0 0.0
    %258 = vmatprep.subr.mxu0 0.0
    %259 = vmatpush2.msra.mxu0 0.0
    %260 = vmatprep.subr.mxu0 0.0
    %261 = vmatpush2.msra.mxu0 0.0
    %262 = vmatprep.mubr.f32.mxu0 0.0
    %263 = vmatmul.mubr.f32.gmra.mxu0 %v189
    %v264 = vpop.f32.mrf.mxu0
    %v265 = vadd.f32 %v181, %v264
    %v266 = vpop.f32.mrf.mxu0
    %267 = vmatprep.mubr.f32.mxu0 0.0
    %268 = vmatmul.mubr.f32.gmra.mxu0 %v192
    %v269 = vpop.f32.mrf.mxu0
    %v270 = vadd.f32 %v185, %v269
    %v271 = vpop.f32.mrf.mxu0
    %272 = vdwg.mxu0
    %v273 = vtanh.pop %v265
    %v274 = vtanh.pop %v270
    %v275 = vld [vmem:[%s1 + $0x14] sm:$0xff]
    %v276 = vld [vmem:[%s1 + $0x1c] sm:$0x3]
    %277 = vset.pattern.permute.xlu0 2
    %278 = vperm.xlu0 %277, %v33
    %v279 = vpop.permute.xlu0 %278
    %281 = vset.pattern.permute.xlu0 2
    %282 = vperm.xlu0 %281, %v34
    %v283 = vpop.permute.xlu0 %282
    %v286 = vsel %vm187, %v275, 0
    %v289 = vsel %vm187, %v276, 0
    %v292 = vsel %vm194, %v274, 0
    %294 = vmatprep.subr.mxu0 0.0
    %295 = vmatpush1.msra.mxu0 0.0
    %296 = vmatprep.subr.mxu0 0.0
    %297 = vmatpush1.msra.mxu0 0.0
    %298 = vmatprep.subr.mxu0 0.0
    %299 = vmatpush1.msra.mxu0 0.0
    %300 = vmatprep.subr.mxu0 0.0
    %301 = vmatpush1.msra.mxu0 0.0
    %302 = vmatprep.subr.mxu0 0.0
    %303 = vmatpush1.msra.mxu0 0.0
    %304 = vmatprep.subr.mxu0 0.0
    %305 = vmatpush1.msra.mxu0 0.0
    %306 = vmatprep.subr.mxu0 0.0
    %307 = vmatpush1.msra.mxu0 0.0
    %308 = vmatprep.subr.mxu0 0.0
    %309 = vmatpush1.msra.mxu0 0.0
    %310 = vmatprep.subr.mxu0 0.0
    %311 = vmatpush1.msra.mxu0 0.0
    %312 = vmatprep.subr.mxu0 0.0
    %313 = vmatpush1.msra.mxu0 0.0
    %314 = vmatprep.subr.mxu0 0.0
    %315 = vmatpush1.msra.mxu0 0.0
    %316 = vmatprep.subr.mxu0 0.0
    %317 = vmatpush1.msra.mxu0 0.0
    %318 = vmatprep.subr.mxu0 0.0
    %319 = vmatpush1.msra.mxu0 0.0
    %320 = vmatprep.subr.mxu0 0.0
    %321 = vmatpush1.msra.mxu0 0.0
    %322 = vmatprep.subr.mxu0 0.0
    %323 = vmatpush1.msra.mxu0 %v292
    %324 = vmatprep.subr.mxu0 0.0
    %325 = vmatpush1.msra.mxu0 %v273
    %326 = vmatprep.subr.mxu0 0.0
    %327 = vmatpush2.msra.mxu0 0.0
    %328 = vmatprep.subr.mxu0 0.0
    %329 = vmatpush2.msra.mxu0 0.0
    %330 = vmatprep.subr.mxu0 0.0
    %331 = vmatpush2.msra.mxu0 0.0
    %332 = vmatprep.subr.mxu0 0.0
    %333 = vmatpush2.msra.mxu0 0.0
    %334 = vmatprep.subr.mxu0 0.0
    %335 = vmatpush2.msra.mxu0 0.0
    %336 = vmatprep.subr.mxu0 0.0
    %337 = vmatpush2.msra.mxu0 0.0
    %338 = vmatprep.subr.mxu0 0.0
    %339 = vmatpush2.msra.mxu0 0.0
    %340 = vmatprep.subr.mxu0 0.0
    %341 = vmatpush2.msra.mxu0 0.0
    %342 = vmatprep.subr.mxu0 0.0
    %343 = vmatpush2.msra.mxu0 0.0
    %344 = vmatprep.subr.mxu0 0.0
    %345 = vmatpush2.msra.mxu0 0.0
    %346 = vmatprep.subr.mxu0 0.0
    %347 = vmatpush2.msra.mxu0 0.0
    %348 = vmatprep.subr.mxu0 0.0
    %349 = vmatpush2.msra.mxu0 0.0
    %350 = vmatprep.subr.mxu0 0.0
    %351 = vmatpush2.msra.mxu0 0.0
    %352 = vmatprep.subr.mxu0 0.0
    %353 = vmatpush2.msra.mxu0 0.0
    %354 = vmatprep.subr.mxu0 0.0
    %355 = vmatpush2.msra.mxu0 0.0
    %356 = vmatprep.subr.mxu0 0.0
    %357 = vmatpush2.msra.mxu0 0.0
    %358 = vmatprep.mubr.f32.mxu0 0.0
    %359 = vmatmul.mubr.f32.gmra.mxu0 %v286
    %v360 = vpop.f32.mrf.mxu0
    %v361 = vadd.f32 %v279, %v360
    %v362 = vpop.f32.mrf.mxu0
    %363 = vmatprep.mubr.f32.mxu0 0.0
    %364 = vmatmul.mubr.f32.gmra.mxu0 %v289
    %v365 = vpop.f32.mrf.mxu0
    %v366 = vadd.f32 %v283, %v365
    %v367 = vpop.f32.mrf.mxu0
    %368 = vdwg.mxu0
    %v369 = vtanh.pop %v361
    %v370 = vtanh.pop %v366
    %v371 = vld [vmem:[%s1 + $0x1e] sm:$0xff]
    %v372 = vld [vmem:[%s1 + $0x26] sm:$0x3]
    %373 = vset.pattern.permute.xlu0 3
    %374 = vperm.xlu0 %373, %v33
    %v375 = vpop.permute.xlu0 %374
    %377 = vset.pattern.permute.xlu0 3
    %378 = vperm.xlu0 %377, %v34
    %v379 = vpop.permute.xlu0 %378
    %v382 = vsel %vm187, %v371, 0
    %v385 = vsel %vm187, %v372, 0
    %v388 = vsel %vm194, %v370, 0
    %390 = vmatprep.subr.mxu0 0.0
    %391 = vmatpush1.msra.mxu0 0.0
    %392 = vmatprep.subr.mxu0 0.0
    %393 = vmatpush1.msra.mxu0 0.0
    %394 = vmatprep.subr.mxu0 0.0
    %395 = vmatpush1.msra.mxu0 0.0
    %396 = vmatprep.subr.mxu0 0.0
    %397 = vmatpush1.msra.mxu0 0.0
    %398 = vmatprep.subr.mxu0 0.0
    %399 = vmatpush1.msra.mxu0 0.0
    %400 = vmatprep.subr.mxu0 0.0
    %401 = vmatpush1.msra.mxu0 0.0
    %402 = vmatprep.subr.mxu0 0.0
    %403 = vmatpush1.msra.mxu0 0.0
    %404 = vmatprep.subr.mxu0 0.0
    %405 = vmatpush1.msra.mxu0 0.0
    %406 = vmatprep.subr.mxu0 0.0
    %407 = vmatpush1.msra.mxu0 0.0
    %408 = vmatprep.subr.mxu0 0.0
    %409 = vmatpush1.msra.mxu0 0.0
    %410 = vmatprep.subr.mxu0 0.0
    %411 = vmatpush1.msra.mxu0 0.0
    %412 = vmatprep.subr.mxu0 0.0
    %413 = vmatpush1.msra.mxu0 0.0
    %414 = vmatprep.subr.mxu0 0.0
    %415 = vmatpush1.msra.mxu0 0.0
    %416 = vmatprep.subr.mxu0 0.0
    %417 = vmatpush1.msra.mxu0 0.0
    %418 = vmatprep.subr.mxu0 0.0
    %419 = vmatpush1.msra.mxu0 %v388
    %420 = vmatprep.subr.mxu0 0.0
    %421 = vmatpush1.msra.mxu0 %v369
    %422 = vmatprep.subr.mxu0 0.0
    %423 = vmatpush2.msra.mxu0 0.0
    %424 = vmatprep.subr.mxu0 0.0
    %425 = vmatpush2.msra.mxu0 0.0
    %426 = vmatprep.subr.mxu0 0.0
    %427 = vmatpush2.msra.mxu0 0.0
    %428 = vmatprep.subr.mxu0 0.0
    %429 = vmatpush2.msra.mxu0 0.0
    %430 = vmatprep.subr.mxu0 0.0
    %431 = vmatpush2.msra.mxu0 0.0
    %432 = vmatprep.subr.mxu0 0.0
    %433 = vmatpush2.msra.mxu0 0.0
    %434 = vmatprep.subr.mxu0 0.0
    %435 = vmatpush2.msra.mxu0 0.0
    %436 = vmatprep.subr.mxu0 0.0
    %437 = vmatpush2.msra.mxu0 0.0
    %438 = vmatprep.subr.mxu0 0.0
    %439 = vmatpush2.msra.mxu0 0.0
    %440 = vmatprep.subr.mxu0 0.0
    %441 = vmatpush2.msra.mxu0 0.0
    %442 = vmatprep.subr.mxu0 0.0
    %443 = vmatpush2.msra.mxu0 0.0
    %444 = vmatprep.subr.mxu0 0.0
    %445 = vmatpush2.msra.mxu0 0.0
    %446 = vmatprep.subr.mxu0 0.0
    %447 = vmatpush2.msra.mxu0 0.0
    %448 = vmatprep.subr.mxu0 0.0
    %449 = vmatpush2.msra.mxu0 0.0
    %450 = vmatprep.subr.mxu0 0.0
    %451 = vmatpush2.msra.mxu0 0.0
    %452 = vmatprep.subr.mxu0 0.0
    %453 = vmatpush2.msra.mxu0 0.0
    %454 = vmatprep.mubr.f32.mxu0 0.0
    %455 = vmatmul.mubr.f32.gmra.mxu0 %v382
    %v456 = vpop.f32.mrf.mxu0
    %v457 = vadd.f32 %v375, %v456
    %v458 = vpop.f32.mrf.mxu0
    %459 = vmatprep.mubr.f32.mxu0 0.0
    %460 = vmatmul.mubr.f32.gmra.mxu0 %v385
    %v461 = vpop.f32.mrf.mxu0
    %v462 = vadd.f32 %v379, %v461
    %v463 = vpop.f32.mrf.mxu0
    %464 = vdwg.mxu0
    %v465 = vtanh.pop %v457
    %v466 = vtanh.pop %v462
    %v467 = vld [vmem:[%s1 + $0x28] sm:$0x3f]
    %v468 = vld [vmem:[%s2] sm:$0x3f]
    %470 = vset.pattern.permute.xlu0 4
    %471 = vperm.xlu0 %470, %v468
    %v472 = vpop.permute.xlu0 %471
    %v475 = vsel %vm187, %v467, 0
    %v478 = vsel %vm194, %v466, 0
    %480 = vmatprep.subr.mxu0 0.0
    %481 = vmatpush1.msra.mxu0 0.0
    %482 = vmatprep.subr.mxu0 0.0
    %483 = vmatpush1.msra.mxu0 0.0
    %484 = vmatprep.subr.mxu0 0.0
    %485 = vmatpush1.msra.mxu0 0.0
    %486 = vmatprep.subr.mxu0 0.0
    %487 = vmatpush1.msra.mxu0 0.0
    %488 = vmatprep.subr.mxu0 0.0
    %489 = vmatpush1.msra.mxu0 0.0
    %490 = vmatprep.subr.mxu0 0.0
    %491 = vmatpush1.msra.mxu0 0.0
    %492 = vmatprep.subr.mxu0 0.0
    %493 = vmatpush1.msra.mxu0 0.0
    %494 = vmatprep.subr.mxu0 0.0
    %495 = vmatpush1.msra.mxu0 0.0
    %496 = vmatprep.subr.mxu0 0.0
    %497 = vmatpush1.msra.mxu0 0.0
    %498 = vmatprep.subr.mxu0 0.0
    %499 = vmatpush1.msra.mxu0 0.0
    %500 = vmatprep.subr.mxu0 0.0
    %501 = vmatpush1.msra.mxu0 0.0
    %502 = vmatprep.subr.mxu0 0.0
    %503 = vmatpush1.msra.mxu0 0.0
    %504 = vmatprep.subr.mxu0 0.0
    %505 = vmatpush1.msra.mxu0 0.0
    %506 = vmatprep.subr.mxu0 0.0
    %507 = vmatpush1.msra.mxu0 0.0
    %508 = vmatprep.subr.mxu0 0.0
    %509 = vmatpush1.msra.mxu0 %v478
    %510 = vmatprep.subr.mxu0 0.0
    %511 = vmatpush1.msra.mxu0 %v465
    %512 = vmatprep.subr.mxu0 0.0
    %513 = vmatpush2.msra.mxu0 0.0
    %514 = vmatprep.subr.mxu0 0.0
    %515 = vmatpush2.msra.mxu0 0.0
    %516 = vmatprep.subr.mxu0 0.0
    %517 = vmatpush2.msra.mxu0 0.0
    %518 = vmatprep.subr.mxu0 0.0
    %519 = vmatpush2.msra.mxu0 0.0
    %520 = vmatprep.subr.mxu0 0.0
    %521 = vmatpush2.msra.mxu0 0.0
    %522 = vmatprep.subr.mxu0 0.0
    %523 = vmatpush2.msra.mxu0 0.0
    %524 = vmatprep.subr.mxu0 0.0
    %525 = vmatpush2.msra.mxu0 0.0
    %526 = vmatprep.subr.mxu0 0.0
    %527 = vmatpush2.msra.mxu0 0.0
    %528 = vmatprep.subr.mxu0 0.0
    %529 = vmatpush2.msra.mxu0 0.0
    %530 = vmatprep.subr.mxu0 0.0
    %531 = vmatpush2.msra.mxu0 0.0
    %532 = vmatprep.subr.mxu0 0.0
    %533 = vmatpush2.msra.mxu0 0.0
    %534 = vmatprep.subr.mxu0 0.0
    %535 = vmatpush2.msra.mxu0 0.0
    %536 = vmatprep.subr.mxu0 0.0
    %537 = vmatpush2.msra.mxu0 0.0
    %538 = vmatprep.subr.mxu0 0.0
    %539 = vmatpush2.msra.mxu0 0.0
    %540 = vmatprep.subr.mxu0 0.0
    %541 = vmatpush2.msra.mxu0 0.0
    %542 = vmatprep.subr.mxu0 0.0
    %543 = vmatpush2.msra.mxu0 0.0
    %544 = vmatprep.mubr.f32.mxu0 0.0
    %545 = vmatmul.mubr.f32.gmra.mxu0 %v475
    %v546 = vpop.f32.mrf.mxu0
    %v547 = vadd.f32 %v472, %v546
    %v548 = vpop.f32.mrf.mxu0
    %549 = vdwg.mxu0
    %v551 = vrot.slane %v547, 1
    %v553 = vsub.f32 %v547, %v551
    %v554 = vmul.f32 %v553, 0.5
    %v555 = vtanh.pop %v554
    %v556 = vadd.f32 %v555, 1.0
    %v557 = vmul.f32 %v556, 0.5
    %558 = vst [vmem:[#allocation2] sm:$0x1] %v557
    %v559 = vsub.f32 1.0, %v557
    %560 = vst [vmem:[#allocation2 + $0x1] sm:$0x1] %v559
    %v561 = vmul.f32 %v547, 1.442695
    %v562 = vpow.pop %v561
    %563 = vst [vmem:[#allocation2] sm:$0xc] %v562
    %564 = vst [vmem:[#allocation2] sm:$0x30] %v547
    // Predicated region
    $region14: #{tpu_custom_call.1} parent=1 // pred_check
      _
    $region15: #{tpu_custom_call.1} parent=1 // pred_check_branch
      %566 = sbr.rel (0) target = $region17
    $region16: #{tpu_custom_call.1} parent=1 // pred_region
      %s568 = ssub.s32 128, 128
      %569 = vsyncadd [#allocation3], %s568
      %s571 = sshll.u32 [#allocation2], 4
      %s572 = int_to_ptr.vmem [resolvable:$true] %s571
      %574 = dma.vmem_to_hbm [thread:$0]  %s572, 128, %s3, [#allocation3]
    $region17: #{tpu_custom_call.1} parent=1 // pred_fallthru
      _
    // Predicated region
    $region18: #{tpu_custom_call.1} parent=1 // pred_check
      _
    $region19: #{tpu_custom_call.1} parent=1 // pred_check_branch
      %576 = sbr.rel (0) target = $region21
    $region20: #{tpu_custom_call.1} parent=1 // pred_region
      %577 = dma.done [#allocation3], 128
    $region21: #{tpu_custom_call.1} parent=1 // pred_fallthru
      _
    %578 = vsyncpa [#allocation3], 1

</llo_original>
